<compile_context>
chip_gen: v7x
topology: tpu7x:2x2x1
jax: 0.10.0
libtpu: 0.0.40
codegen_flags: <defaults>
</compile_context>

<pallas_src>
import jax
import jax.numpy as jnp
from jax.experimental import pallas as pl
from jax.experimental.pallas import tpu as pltpu


def _bcast_mul_kernel(scale_ref, x_ref, o_ref):
    # scale_ref: (Cb, 1), x_ref: (Cb, HW), o_ref: (Cb, HW)
    # Broadcast across the lane (HW) axis happens for free on the VPU.
    o_ref[...] = x_ref[...] * scale_ref[...]


def broadcast_mul(x208, x203):
    """Elementwise multiply with broadcasting, matching torch semantics.

    x208: (N, C, 1, 1), x203: (N, C, H, W) -> (N, C, H, W)
    """
    n, c, h, w = x203.shape
    assert x208.shape == (n, c, 1, 1)
    assert n == 1, "kernel written for N=1 (matches the module spec)"
    hw = h * w

    x_flat = x203.reshape(c, hw)      # (C, HW) -- lane axis is the spatial dim
    scale_flat = x208.reshape(c, 1)   # (C, 1)  -- broadcast over lanes in-kernel

    # At most 2 channel blocks ("parallel") so v7x can shard across both TCs.
    # More blocks would only add per-step overhead to a DMA-bound op.
    if c % 16 == 0:
        num_blocks = 2
    else:
        num_blocks = 1
    block_c = c // num_blocks

    out_flat = pl.pallas_call(
        _bcast_mul_kernel,
        out_shape=jax.ShapeDtypeStruct((c, hw), x203.dtype),
        grid=(num_blocks,),
        in_specs=[
            pl.BlockSpec((block_c, 1), lambda i: (i, 0)),
            pl.BlockSpec((block_c, hw), lambda i: (i, 0)),
        ],
        out_specs=pl.BlockSpec((block_c, hw), lambda i: (i, 0)),
        compiler_params=pltpu.CompilerParams(
            dimension_semantics=("parallel",)
        ),
    )(scale_flat, x_flat)

    return out_flat.reshape(n, c, h, w)


if __name__ == "__main__":
    key = jax.random.PRNGKey(0)
    k1, k2 = jax.random.split(key)

    # Shapes implied by the module's forward (already small: ~0.5 MB each way).
    x203 = jax.random.normal(k1, (1, 672, 14, 14), dtype=jnp.float32)
    x208 = jax.random.normal(k2, (1, 672, 1, 1), dtype=jnp.float32)

    out = broadcast_mul(x208, x203)
    out = jax.block_until_ready(out)

    # Sanity check against plain JAX broadcasting (same semantics as torch).
    ref = x208 * x203
    assert out.shape == (1, 672, 14, 14)
    assert jnp.allclose(out, ref, atol=1e-6, rtol=1e-6)

    print("KERNEL_OK")
</pallas_src>

<mosaic_0001>
module attributes {stable_mosaic.version = 11 : i64} {
  func.func @_bcast_mul_kernel(%arg0: i32, %arg1: memref<336x1xf32, #tpu.memory_space<vmem>>, %arg2: memref<336x196xf32, #tpu.memory_space<vmem>>, %arg3: memref<336x196xf32, #tpu.memory_space<vmem>>) attributes {dimension_semantics = [#tpu.dimension_semantics<parallel>], iteration_bounds = array<i64: 2>, scalar_prefetch = 0 : i64, scratch_operands = 0 : i64, tpu.core_type = #tpu.core_type<tc>, window_params = [{transform_indices = @transform_0, window_bounds = array<i64: 336, 1>}, {transform_indices = @transform_1, window_bounds = array<i64: 336, 196>}, {transform_indices = @transform_2, window_bounds = array<i64: 336, 196>}]} {
    %c0 = arith.constant 0 : index
    %c0_0 = arith.constant 0 : index
    %0 = vector.load %arg2[%c0, %c0_0] : memref<336x196xf32, #tpu.memory_space<vmem>>, vector<336x196xf32>
    %c0_1 = arith.constant 0 : index
    %c0_2 = arith.constant 0 : index
    %1 = vector.load %arg1[%c0_1, %c0_2] : memref<336x1xf32, #tpu.memory_space<vmem>>, vector<336x1xf32>
    %2 = vector.broadcast %1 : vector<336x1xf32> to vector<336x196xf32>
    %3 = arith.mulf %0, %2 : vector<336x196xf32>
    %c0_3 = arith.constant 0 : index
    %c0_4 = arith.constant 0 : index
    %4 = vector.load %arg3[%c0_3, %c0_4] : memref<336x196xf32, #tpu.memory_space<vmem>>, vector<336x196xf32>
    tpu.vector_store %arg3[%c0_3, %c0_4], %3 {strides = array<i32>} : memref<336x196xf32, #tpu.memory_space<vmem>>, vector<336x196xf32>,
    return
  }
  func.func @transform_0(%arg0: i32) -> (i32, i32) {
    %c0_i32 = arith.constant 0 : i32
    %c0_i32_0 = arith.constant 0 : i32
    return %arg0, %c0_i32 : i32, i32
  }
  func.func @transform_1(%arg0: i32) -> (i32, i32) {
    %c0_i32 = arith.constant 0 : i32
    %c0_i32_0 = arith.constant 0 : i32
    return %arg0, %c0_i32 : i32, i32
  }
  func.func @transform_2(%arg0: i32) -> (i32, i32) {
    %c0_i32 = arith.constant 0 : i32
    %c0_i32_0 = arith.constant 0 : i32
    return %arg0, %c0_i32 : i32, i32
  }
}

</mosaic_0001>

<llo_original>
// kernel: tpu_custom_call.1
$region0: #{tpu_custom_call.1}
  #allocation0 [shape = 'u32[]', space=smem, size = 0x4, offset = 0x4, fixed_abs, tag = 'smem constant byte address 0x4 - core index']
  #allocation1 [shape = 'u32[144,128]{1,0:T(1,128)}', space=vmem, size = 0x12000, scoped, tag = 'internal scratch']
  %s0 = inlined_call_operand.vmem [shape: f32[672,1], index: 0, kind: input, shape index: {}]
  %s1 = inlined_call_operand.vmem [shape: f32[672,196], index: 1, kind: input, shape index: {}]
  %s2 = inlined_call_operand.vmem [shape: f32[672,196], index: 2, kind: output, shape index: {}]
  %s3 = sld [smem:[#allocation0]]
  $region41: #{tpu_custom_call.1} parent=0
    _
  %s5 = ssub.s32 1, %s3
  %s6 = scalar_select 0, %s5, %s3
  loop: start=0, step=1, limit=4
  $region2: #{tpu_custom_call.1} parent=0 // loop_pre_header
    _
  $region3: #{tpu_custom_call.1} parent=0 // loop_header
    %s8 = sphi 0, %s12
    %p9 = scmp.ge.s32.totalorder %s8, 4
    %s18 = sphi 0, %s20
    %s21 = sphi 0, %s18
    %s22 = sphi 0, %s21
    %s38 = sphi 0, %s22
    %s44 = sphi 0, %s46
    %s47 = sphi 0, %s44
    %s48 = sphi 0, %s47
    %s64 = sphi 0, %s48
    %s70 = sphi 0, %s72
    %s73 = sphi 0, %s70
    %s74 = sphi 0, %s73
    %s90 = sphi 0, %s74
  $region4: #{tpu_custom_call.1} parent=0 // loop_header_branch
    %11 = sbr.rel (%p9) target = $region8
  $region5: #{tpu_custom_call.1} parent=0 // loop_body
    %s13 = ssub.s32 %s8, 1
    %s14 = ssub.s32 %s8, 2
    %s15 = sadd.s32 %s8, 1
    %s16 = ssub.s32 %s8, %s15
    %p17 = scmp.eq.s32.totalorder %s16, 0
    %s19 = sadd.s32 %s18, 1
    %s20 = scalar_select %p17, %s18, %s19
    %p23 = pneg %p17
    %p24 = scmp.eq.s32.totalorder %s8, 1
    %p25 = por %p23, %p24
    %p26 = scmp.ne.s32.totalorder %s18, %s21
    %p27 = scmp.eq.s32.totalorder %s8, 0
    %p28 = por %p26, %p27
    %p29 = scmp.ne.s32.totalorder %s18, %s21
    %p30 = scmp.eq.s32.totalorder %s13, 1
    %p31 = por %p29, %p30
    %p32 = scmp.ne.s32.totalorder %s21, %s22
    %p33 = scmp.eq.s32.totalorder %s13, 0
    %p34 = por %p32, %p33
    %p35 = scmp.ne.s32.totalorder %s21, %s22
    %p36 = scmp.eq.s32.totalorder %s14, 1
    %p37 = por %p35, %p36
    %p39 = scmp.ne.s32.totalorder %s22, %s38
    %p40 = scmp.eq.s32.totalorder %s14, 0
    %p41 = por %p39, %p40
    %s42 = ssub.s32 %s8, %s15
    %p43 = scmp.eq.s32.totalorder %s42, 0
    %s45 = sadd.s32 %s44, 1
    %s46 = scalar_select %p43, %s44, %s45
    %p49 = pneg %p43
    %p50 = scmp.eq.s32.totalorder %s8, 1
    %p51 = por %p49, %p50
    %p52 = scmp.ne.s32.totalorder %s44, %s47
    %p53 = scmp.eq.s32.totalorder %s8, 0
    %p54 = por %p52, %p53
    %p55 = scmp.ne.s32.totalorder %s44, %s47
    %p56 = scmp.eq.s32.totalorder %s13, 1
    %p57 = por %p55, %p56
    %p58 = scmp.ne.s32.totalorder %s47, %s48
    %p59 = scmp.eq.s32.totalorder %s13, 0
    %p60 = por %p58, %p59
    %p61 = scmp.ne.s32.totalorder %s47, %s48
    %p62 = scmp.eq.s32.totalorder %s14, 1
    %p63 = por %p61, %p62
    %p65 = scmp.ne.s32.totalorder %s48, %s64
    %p66 = scmp.eq.s32.totalorder %s14, 0
    %p67 = por %p65, %p66
    %s68 = ssub.s32 %s8, %s15
    %p69 = scmp.eq.s32.totalorder %s68, 0
    %s71 = sadd.s32 %s70, 1
    %s72 = scalar_select %p69, %s70, %s71
    %p75 = pneg %p69
    %p76 = scmp.eq.s32.totalorder %s8, 1
    %p77 = por %p75, %p76
    %p78 = scmp.ne.s32.totalorder %s70, %s73
    %p79 = scmp.eq.s32.totalorder %s8, 0
    %p80 = por %p78, %p79
    %p81 = scmp.ne.s32.totalorder %s70, %s73
    %p82 = scmp.eq.s32.totalorder %s13, 1
    %p83 = por %p81, %p82
    %p84 = scmp.ne.s32.totalorder %s73, %s74
    %p85 = scmp.eq.s32.totalorder %s13, 0
    %p86 = por %p84, %p85
    %p87 = scmp.ne.s32.totalorder %s73, %s74
    %p88 = scmp.eq.s32.totalorder %s14, 1
    %p89 = por %p87, %p88
    %p91 = scmp.ne.s32.totalorder %s74, %s90
    %p92 = scmp.eq.s32.totalorder %s14, 0
    %p93 = por %p91, %p92
    %p94 = scmp.le.s32.totalorder 1, %s8
    %p95 = scmp.lt.s32.totalorder %s8, 3
    %p96 = pnand %p94, %p95
    %p97 = pneg %p96
    // Predicated region
    $region9: #{tpu_custom_call.1} parent=5 // pred_check
      _
    $region10: #{tpu_custom_call.1} parent=5 // pred_check_branch
      %99 = sbr.rel (%p96) target = $region12
    $region11: #{tpu_custom_call.1} parent=5 // pred_region
      %s100 = ssub.s32 %s8, 1
    $region12: #{tpu_custom_call.1} parent=5 // pred_fallthru
      _
    %p101 = scmp.lt.s32.totalorder %s8, 2
    // Predicated region
    $region13: #{tpu_custom_call.1} parent=5 // pred_check
      %p102 = pneg %p101
    $region14: #{tpu_custom_call.1} parent=5 // pred_check_branch
      %104 = sbr.rel (%p102) target = $region16
    $region15: #{tpu_custom_call.1} parent=5 // pred_region
      // Predicated region
      $region17: #{tpu_custom_call.1} parent=15 // pred_check
        %p105 = pneg %p28
      $region18: #{tpu_custom_call.1} parent=15 // pred_check_branch
        %107 = sbr.rel (%p105) target = $region20
      $region19: #{tpu_custom_call.1} parent=15 // pred_region
        %s108 = smul.u32 42, %s8
        %p109 = scmp.lt.s32.totalorder %s108, 83
        %s110 = scalar_select %p109, %s108, 83
        %s111 = smul.addr %s110, 8
        %s112 = scalar_lea.vmem %s0, %s111
        %s113 = smul.u32 42, %s8
      $region20: #{tpu_custom_call.1} parent=15 // pred_fallthru
        _
      // Predicated region
      $region21: #{tpu_custom_call.1} parent=15 // pred_check
        %p114 = pneg %p54
      $region22: #{tpu_custom_call.1} parent=15 // pred_check_branch
        %116 = sbr.rel (%p114) target = $region24
      $region23: #{tpu_custom_call.1} parent=15 // pred_region
        %s117 = smul.u32 42, %s8
        %p118 = scmp.lt.s32.totalorder %s117, 83
        %s119 = scalar_select %p118, %s117, 83
        %s120 = smul.addr %s119, 2
        %s121 = smul.addr %s120, 8
        %s122 = scalar_lea.vmem %s1, %s121
        %s123 = smul.u32 42, %s8
      $region24: #{tpu_custom_call.1} parent=15 // pred_fallthru
        _
    $region16: #{tpu_custom_call.1} parent=5 // pred_fallthru
      _
    %p124 = scmp.le.s32.totalorder 1, %s8
    %p125 = scmp.lt.s32.totalorder %s8, 3
    %p126 = pnand %p124, %p125
    %p127 = pneg %p126
    // Predicated region
    $region25: #{tpu_custom_call.1} parent=5 // pred_check
      _
    $region26: #{tpu_custom_call.1} parent=5 // pred_check_branch
      %129 = sbr.rel (%p126) target = $region28
    $region27: #{tpu_custom_call.1} parent=5 // pred_region
      %s130 = ssub.s32 %s8, 1
      %s131 = smul.u32 42, %s13
      %p132 = scmp.lt.s32.totalorder %s131, 83
      %s133 = scalar_select %p132, %s131, 83
      %s134 = smul.addr %s133, 8
      %s135 = scalar_lea.vmem %s0, %s134
      %p136 = pneg %p34
      %p137 = pneg %p31
      %s138 = smul.u32 42, %s13
      %p139 = scmp.lt.s32.totalorder %s138, 83
      %s140 = scalar_select %p139, %s138, 83
      %s141 = smul.addr %s140, 2
      %s142 = smul.addr %s141, 8
      %s143 = scalar_lea.vmem %s1, %s142
      %p144 = pneg %p60
      %p145 = pneg %p57
      %p146 = pneg %p86
      %p147 = pneg %p83
      %s148 = smul.u32 42, %s13
      %p149 = scmp.lt.s32.totalorder %s148, 83
      %s150 = scalar_select %p149, %s148, 83
      %s151 = smul.addr %s150, 2
      %s152 = smul.addr %s151, 8
      %s153 = scalar_lea.vmem %s2, %s152
      %s154 = smul.u32 42, %s13
      %p155 = scmp.lt.s32.totalorder %s154, 83
      %s156 = scalar_select %p155, %s154, 83
      %s157 = smul.addr %s156, 8
      %s158 = scalar_lea.vmem %s0, %s157
      %s159 = smul.u32 42, %s13
      %s160 = smul.u32 42, %s13
      %p161 = scmp.lt.s32.totalorder %s160, 83
      %s162 = scalar_select %p161, %s160, 83
      %s163 = smul.addr %s162, 2
      %s164 = smul.addr %s163, 8
      %s165 = scalar_lea.vmem %s1, %s164
      %s166 = smul.u32 42, %s13
      %s167 = smul.u32 42, %s13
      %p168 = scmp.lt.s32.totalorder %s167, 83
      %s169 = scalar_select %p168, %s167, 83
      %s170 = smul.addr %s169, 2
      %s171 = smul.addr %s170, 8
      %s172 = scalar_lea.vmem %s2, %s171
      %s173 = smul.u32 42, %s13
      %v174 = vld [vmem:[%s165] sm:$0xff]
      %v175 = vld [vmem:[%s165 + $0x8] sm:$0xff]
      %v176 = vld [vmem:[%s165 + $0x10] sm:$0xff]
      %v177 = vld [vmem:[%s165 + $0x18] sm:$0xff]
      %v178 = vld [vmem:[%s165 + $0x20] sm:$0xff]
      %v179 = vld [vmem:[%s165 + $0x28] sm:$0xff]
      %v180 = vld [vmem:[%s165 + $0x30] sm:$0xff]
      %v181 = vld [vmem:[%s165 + $0x38] sm:$0xff]
      %v182 = vld [vmem:[%s165 + $0x40] sm:$0xff]
      %v183 = vld [vmem:[%s165 + $0x48] sm:$0xff]
      %v184 = vld [vmem:[%s165 + $0x50] sm:$0xff]
      %v185 = vld [vmem:[%s165 + $0x58] sm:$0xff]
      %v186 = vld [vmem:[%s165 + $0x60] sm:$0xff]
      %v187 = vld [vmem:[%s165 + $0x68] sm:$0xff]
      %v188 = vld [vmem:[%s165 + $0x70] sm:$0xff]
      %v189 = vld [vmem:[%s165 + $0x78] sm:$0xff]
      %v190 = vld [vmem:[%s165 + $0x80] sm:$0xff]
      %v191 = vld [vmem:[%s165 + $0x88] sm:$0xff]
      %v192 = vld [vmem:[%s165 + $0x90] sm:$0xff]
      %v193 = vld [vmem:[%s165 + $0x98] sm:$0xff]
      %v194 = vld [vmem:[%s165 + $0xa0] sm:$0xff]
      %v195 = vld [vmem:[%s165 + $0xa8] sm:$0xff]
      %v196 = vld [vmem:[%s165 + $0xb0] sm:$0xff]
      %v197 = vld [vmem:[%s165 + $0xb8] sm:$0xff]
      %v198 = vld [vmem:[%s165 + $0xc0] sm:$0xff]
      %v199 = vld [vmem:[%s165 + $0xc8] sm:$0xff]
      %v200 = vld [vmem:[%s165 + $0xd0] sm:$0xff]
      %v201 = vld [vmem:[%s165 + $0xd8] sm:$0xff]
      %v202 = vld [vmem:[%s165 + $0xe0] sm:$0xff]
      %v203 = vld [vmem:[%s165 + $0xe8] sm:$0xff]
      %v204 = vld [vmem:[%s165 + $0xf0] sm:$0xff]
      %v205 = vld [vmem:[%s165 + $0xf8] sm:$0xff]
      %v206 = vld [vmem:[%s165 + $0x100] sm:$0xff]
      %v207 = vld [vmem:[%s165 + $0x108] sm:$0xff]
      %v208 = vld [vmem:[%s165 + $0x110] sm:$0xff]
      %v209 = vld [vmem:[%s165 + $0x118] sm:$0xff]
      %v210 = vld [vmem:[%s165 + $0x120] sm:$0xff]
      %v211 = vld [vmem:[%s165 + $0x128] sm:$0xff]
      %v212 = vld [vmem:[%s165 + $0x130] sm:$0xff]
      %v213 = vld [vmem:[%s165 + $0x138] sm:$0xff]
      %v214 = vld [vmem:[%s165 + $0x140] sm:$0xff]
      %v215 = vld [vmem:[%s165 + $0x148] sm:$0xff]
      %v216 = vld [vmem:[%s165 + $0x150] sm:$0xff]
      %v217 = vld [vmem:[%s165 + $0x158] sm:$0xff]
      %v218 = vld [vmem:[%s165 + $0x160] sm:$0xff]
      %v219 = vld [vmem:[%s165 + $0x168] sm:$0xff]
      %v220 = vld [vmem:[%s165 + $0x170] sm:$0xff]
      %v221 = vld [vmem:[%s165 + $0x178] sm:$0xff]
      %v222 = vld [vmem:[%s165 + $0x180] sm:$0xff]
      %v223 = vld [vmem:[%s165 + $0x188] sm:$0xff]
      %v224 = vld [vmem:[%s165 + $0x190] sm:$0xff]
      %v225 = vld [vmem:[%s165 + $0x198] sm:$0xff]
      %v226 = vld [vmem:[%s165 + $0x1a0] sm:$0xff]
      %v227 = vld [vmem:[%s165 + $0x1a8] sm:$0xff]
      %v228 = vld [vmem:[%s165 + $0x1b0] sm:$0xff]
      %v229 = vld [vmem:[%s165 + $0x1b8] sm:$0xff]
      %v230 = vld [vmem:[%s165 + $0x1c0] sm:$0xff]
      %v231 = vld [vmem:[%s165 + $0x1c8] sm:$0xff]
      %v232 = vld [vmem:[%s165 + $0x1d0] sm:$0xff]
      %v233 = vld [vmem:[%s165 + $0x1d8] sm:$0xff]
      %v234 = vld [vmem:[%s165 + $0x1e0] sm:$0xff]
      %v235 = vld [vmem:[%s165 + $0x1e8] sm:$0xff]
      %v236 = vld [vmem:[%s165 + $0x1f0] sm:$0xff]
      %v237 = vld [vmem:[%s165 + $0x1f8] sm:$0xff]
      %v238 = vld [vmem:[%s165 + $0x200] sm:$0xff]
      %v239 = vld [vmem:[%s165 + $0x208] sm:$0xff]
      %v240 = vld [vmem:[%s165 + $0x210] sm:$0xff]
      %v241 = vld [vmem:[%s165 + $0x218] sm:$0xff]
      %v242 = vld [vmem:[%s165 + $0x220] sm:$0xff]
      %v243 = vld [vmem:[%s165 + $0x228] sm:$0xff]
      %v244 = vld [vmem:[%s165 + $0x230] sm:$0xff]
      %v245 = vld [vmem:[%s165 + $0x238] sm:$0xff]
      %v246 = vld [vmem:[%s165 + $0x240] sm:$0xff]
      %v247 = vld [vmem:[%s165 + $0x248] sm:$0xff]
      %v248 = vld [vmem:[%s165 + $0x250] sm:$0xff]
      %v249 = vld [vmem:[%s165 + $0x258] sm:$0xff]
      %v250 = vld [vmem:[%s165 + $0x260] sm:$0xff]
      %v251 = vld [vmem:[%s165 + $0x268] sm:$0xff]
      %v252 = vld [vmem:[%s165 + $0x270] sm:$0xff]
      %v253 = vld [vmem:[%s165 + $0x278] sm:$0xff]
      %v254 = vld [vmem:[%s165 + $0x280] sm:$0xff]
      %v255 = vld [vmem:[%s165 + $0x288] sm:$0xff]
      %v256 = vld [vmem:[%s165 + $0x290] sm:$0xff]
      %v257 = vld [vmem:[%s165 + $0x298] sm:$0xff]
      %v258 = vld [vmem:[%s158] sm:$0xff]
      %v259 = vld [vmem:[%s158 + $0x8] sm:$0xff]
      %v260 = vld [vmem:[%s158 + $0x10] sm:$0xff]
      %v261 = vld [vmem:[%s158 + $0x18] sm:$0xff]
      %v262 = vld [vmem:[%s158 + $0x20] sm:$0xff]
      %v263 = vld [vmem:[%s158 + $0x28] sm:$0xff]
      %v264 = vld [vmem:[%s158 + $0x30] sm:$0xff]
      %v265 = vld [vmem:[%s158 + $0x38] sm:$0xff]
      %v266 = vld [vmem:[%s158 + $0x40] sm:$0xff]
      %v267 = vld [vmem:[%s158 + $0x48] sm:$0xff]
      %v268 = vld [vmem:[%s158 + $0x50] sm:$0xff]
      %v269 = vld [vmem:[%s158 + $0x58] sm:$0xff]
      %v270 = vld [vmem:[%s158 + $0x60] sm:$0xff]
      %v271 = vld [vmem:[%s158 + $0x68] sm:$0xff]
      %v272 = vld [vmem:[%s158 + $0x70] sm:$0xff]
      %v273 = vld [vmem:[%s158 + $0x78] sm:$0xff]
      %v274 = vld [vmem:[%s158 + $0x80] sm:$0xff]
      %v275 = vld [vmem:[%s158 + $0x88] sm:$0xff]
      %v276 = vld [vmem:[%s158 + $0x90] sm:$0xff]
      %v277 = vld [vmem:[%s158 + $0x98] sm:$0xff]
      %v278 = vld [vmem:[%s158 + $0xa0] sm:$0xff]
      %v279 = vld [vmem:[%s158 + $0xa8] sm:$0xff]
      %v280 = vld [vmem:[%s158 + $0xb0] sm:$0xff]
      %v281 = vld [vmem:[%s158 + $0xb8] sm:$0xff]
      %v282 = vld [vmem:[%s158 + $0xc0] sm:$0xff]
      %v283 = vld [vmem:[%s158 + $0xc8] sm:$0xff]
      %v284 = vld [vmem:[%s158 + $0xd0] sm:$0xff]
      %v285 = vld [vmem:[%s158 + $0xd8] sm:$0xff]
      %v286 = vld [vmem:[%s158 + $0xe0] sm:$0xff]
      %v287 = vld [vmem:[%s158 + $0xe8] sm:$0xff]
      %v288 = vld [vmem:[%s158 + $0xf0] sm:$0xff]
      %v289 = vld [vmem:[%s158 + $0xf8] sm:$0xff]
      %v290 = vld [vmem:[%s158 + $0x100] sm:$0xff]
      %v291 = vld [vmem:[%s158 + $0x108] sm:$0xff]
      %v292 = vld [vmem:[%s158 + $0x110] sm:$0xff]
      %v293 = vld [vmem:[%s158 + $0x118] sm:$0xff]
      %v294 = vld [vmem:[%s158 + $0x120] sm:$0xff]
      %v295 = vld [vmem:[%s158 + $0x128] sm:$0xff]
      %v296 = vld [vmem:[%s158 + $0x130] sm:$0xff]
      %v297 = vld [vmem:[%s158 + $0x138] sm:$0xff]
      %v298 = vld [vmem:[%s158 + $0x140] sm:$0xff]
      %v299 = vld [vmem:[%s158 + $0x148] sm:$0xff]
      %301 = vset.pattern.permute.xlu0 0
      %302 = vperm.xlu0 %301, %v258
      %v303 = vpop.permute.xlu0 %302
      %306 = vset.pattern.permute.xlu0 0
      %307 = vperm.xlu0 %306, %v259
      %v308 = vpop.permute.xlu0 %307
      %311 = vset.pattern.permute.xlu0 0
      %312 = vperm.xlu0 %311, %v260
      %v313 = vpop.permute.xlu0 %312
      %316 = vset.pattern.permute.xlu0 0
      %317 = vperm.xlu0 %316, %v261
      %v318 = vpop.permute.xlu0 %317
      %321 = vset.pattern.permute.xlu0 0
      %322 = vperm.xlu0 %321, %v262
      %v323 = vpop.permute.xlu0 %322
      %326 = vset.pattern.permute.xlu0 0
      %327 = vperm.xlu0 %326, %v263
      %v328 = vpop.permute.xlu0 %327
      %331 = vset.pattern.permute.xlu0 0
      %332 = vperm.xlu0 %331, %v264
      %v333 = vpop.permute.xlu0 %332
      %336 = vset.pattern.permute.xlu0 0
      %337 = vperm.xlu0 %336, %v265
      %v338 = vpop.permute.xlu0 %337
      %341 = vset.pattern.permute.xlu0 0
      %342 = vperm.xlu0 %341, %v266
      %v343 = vpop.permute.xlu0 %342
      %346 = vset.pattern.permute.xlu0 0
      %347 = vperm.xlu0 %346, %v267
      %v348 = vpop.permute.xlu0 %347
      %351 = vset.pattern.permute.xlu0 0
      %352 = vperm.xlu0 %351, %v268
      %v353 = vpop.permute.xlu0 %352
      %356 = vset.pattern.permute.xlu0 0
      %357 = vperm.xlu0 %356, %v269
      %v358 = vpop.permute.xlu0 %357
      %361 = vset.pattern.permute.xlu0 0
      %362 = vperm.xlu0 %361, %v270
      %v363 = vpop.permute.xlu0 %362
      %366 = vset.pattern.permute.xlu0 0
      %367 = vperm.xlu0 %366, %v271
      %v368 = vpop.permute.xlu0 %367
      %371 = vset.pattern.permute.xlu0 0
      %372 = vperm.xlu0 %371, %v272
      %v373 = vpop.permute.xlu0 %372
      %376 = vset.pattern.permute.xlu0 0
      %377 = vperm.xlu0 %376, %v273
      %v378 = vpop.permute.xlu0 %377
      %381 = vset.pattern.permute.xlu0 0
      %382 = vperm.xlu0 %381, %v274
      %v383 = vpop.permute.xlu0 %382
      %386 = vset.pattern.permute.xlu0 0
      %387 = vperm.xlu0 %386, %v275
      %v388 = vpop.permute.xlu0 %387
      %391 = vset.pattern.permute.xlu0 0
      %392 = vperm.xlu0 %391, %v276
      %v393 = vpop.permute.xlu0 %392
      %396 = vset.pattern.permute.xlu0 0
      %397 = vperm.xlu0 %396, %v277
      %v398 = vpop.permute.xlu0 %397
      %401 = vset.pattern.permute.xlu0 0
      %402 = vperm.xlu0 %401, %v278
      %v403 = vpop.permute.xlu0 %402
      %406 = vset.pattern.permute.xlu0 0
      %407 = vperm.xlu0 %406, %v279
      %v408 = vpop.permute.xlu0 %407
      %411 = vset.pattern.permute.xlu0 0
      %412 = vperm.xlu0 %411, %v280
      %v413 = vpop.permute.xlu0 %412
      %416 = vset.pattern.permute.xlu0 0
      %417 = vperm.xlu0 %416, %v281
      %v418 = vpop.permute.xlu0 %417
      %421 = vset.pattern.permute.xlu0 0
      %422 = vperm.xlu0 %421, %v282
      %v423 = vpop.permute.xlu0 %422
      %426 = vset.pattern.permute.xlu0 0
      %427 = vperm.xlu0 %426, %v283
      %v428 = vpop.permute.xlu0 %427
      %431 = vset.pattern.permute.xlu0 0
      %432 = vperm.xlu0 %431, %v284
      %v433 = vpop.permute.xlu0 %432
      %436 = vset.pattern.permute.xlu0 0
      %437 = vperm.xlu0 %436, %v285
      %v438 = vpop.permute.xlu0 %437
      %441 = vset.pattern.permute.xlu0 0
      %442 = vperm.xlu0 %441, %v286
      %v443 = vpop.permute.xlu0 %442
      %446 = vset.pattern.permute.xlu0 0
      %447 = vperm.xlu0 %446, %v287
      %v448 = vpop.permute.xlu0 %447
      %451 = vset.pattern.permute.xlu0 0
      %452 = vperm.xlu0 %451, %v288
      %v453 = vpop.permute.xlu0 %452
      %456 = vset.pattern.permute.xlu0 0
      %457 = vperm.xlu0 %456, %v289
      %v458 = vpop.permute.xlu0 %457
      %461 = vset.pattern.permute.xlu0 0
      %462 = vperm.xlu0 %461, %v290
      %v463 = vpop.permute.xlu0 %462
      %466 = vset.pattern.permute.xlu0 0
      %467 = vperm.xlu0 %466, %v291
      %v468 = vpop.permute.xlu0 %467
      %471 = vset.pattern.permute.xlu0 0
      %472 = vperm.xlu0 %471, %v292
      %v473 = vpop.permute.xlu0 %472
      %476 = vset.pattern.permute.xlu0 0
      %477 = vperm.xlu0 %476, %v293
      %v478 = vpop.permute.xlu0 %477
      %481 = vset.pattern.permute.xlu0 0
      %482 = vperm.xlu0 %481, %v294
      %v483 = vpop.permute.xlu0 %482
      %486 = vset.pattern.permute.xlu0 0
      %487 = vperm.xlu0 %486, %v295
      %v488 = vpop.permute.xlu0 %487
      %491 = vset.pattern.permute.xlu0 0
      %492 = vperm.xlu0 %491, %v296
      %v493 = vpop.permute.xlu0 %492
      %496 = vset.pattern.permute.xlu0 0
      %497 = vperm.xlu0 %496, %v297
      %v498 = vpop.permute.xlu0 %497
      %501 = vset.pattern.permute.xlu0 0
      %502 = vperm.xlu0 %501, %v298
      %v503 = vpop.permute.xlu0 %502
      %506 = vset.pattern.permute.xlu0 0
      %507 = vperm.xlu0 %506, %v299
      %v508 = vpop.permute.xlu0 %507
      %v510 = vmul.f32 %v174, %v303
      %v511 = vmul.f32 %v175, %v303
      %v512 = vmul.f32 %v176, %v308
      %v513 = vmul.f32 %v177, %v308
      %v514 = vmul.f32 %v178, %v313
      %v515 = vmul.f32 %v179, %v313
      %v516 = vmul.f32 %v180, %v318
      %v517 = vmul.f32 %v181, %v318
      %v518 = vmul.f32 %v182, %v323
      %v519 = vmul.f32 %v183, %v323
      %v520 = vmul.f32 %v184, %v328
      %v521 = vmul.f32 %v185, %v328
      %v522 = vmul.f32 %v186, %v333
      %v523 = vmul.f32 %v187, %v333
      %v524 = vmul.f32 %v188, %v338
      %v525 = vmul.f32 %v189, %v338
      %v526 = vmul.f32 %v190, %v343
      %v527 = vmul.f32 %v191, %v343
      %v528 = vmul.f32 %v192, %v348
      %v529 = vmul.f32 %v193, %v348
      %v530 = vmul.f32 %v194, %v353
      %v531 = vmul.f32 %v195, %v353
      %v532 = vmul.f32 %v196, %v358
      %v533 = vmul.f32 %v197, %v358
      %v534 = vmul.f32 %v198, %v363
      %v535 = vmul.f32 %v199, %v363
      %v536 = vmul.f32 %v200, %v368
      %v537 = vmul.f32 %v201, %v368
      %v538 = vmul.f32 %v202, %v373
      %v539 = vmul.f32 %v203, %v373
      %v540 = vmul.f32 %v204, %v378
      %v541 = vmul.f32 %v205, %v378
      %v542 = vmul.f32 %v206, %v383
      %v543 = vmul.f32 %v207, %v383
      %v544 = vmul.f32 %v208, %v388
      %v545 = vmul.f32 %v209, %v388
      %v546 = vmul.f32 %v210, %v393
      %v547 = vmul.f32 %v211, %v393
      %v548 = vmul.f32 %v212, %v398
      %v549 = vmul.f32 %v213, %v398
      %v550 = vmul.f32 %v214, %v403
      %v551 = vmul.f32 %v215, %v403
      %v552 = vmul.f32 %v216, %v408
      %v553 = vmul.f32 %v217, %v408
      %v554 = vmul.f32 %v218, %v413
      %v555 = vmul.f32 %v219, %v413
      %v556 = vmul.f32 %v220, %v418
      %v557 = vmul.f32 %v221, %v418
      %v558 = vmul.f32 %v222, %v423
      %v559 = vmul.f32 %v223, %v423
      %v560 = vmul.f32 %v224, %v428
      %v561 = vmul.f32 %v225, %v428
      %v562 = vmul.f32 %v226, %v433
      %v563 = vmul.f32 %v227, %v433
      %v564 = vmul.f32 %v228, %v438
      %v565 = vmul.f32 %v229, %v438
      %v566 = vmul.f32 %v230, %v443
      %v567 = vmul.f32 %v231, %v443
      %v568 = vmul.f32 %v232, %v448
      %v569 = vmul.f32 %v233, %v448
      %v570 = vmul.f32 %v234, %v453
      %v571 = vmul.f32 %v235, %v453
      %v572 = vmul.f32 %v236, %v458
      %v573 = vmul.f32 %v237, %v458
      %v574 = vmul.f32 %v238, %v463
      %v575 = vmul.f32 %v239, %v463
      %v576 = vmul.f32 %v240, %v468
      %v577 = vmul.f32 %v241, %v468
      %v578 = vmul.f32 %v242, %v473
      %v579 = vmul.f32 %v243, %v473
      %v580 = vmul.f32 %v244, %v478
      %v581 = vmul.f32 %v245, %v478
      %v582 = vmul.f32 %v246, %v483
      %v583 = vmul.f32 %v247, %v483
      %v584 = vmul.f32 %v248, %v488
      %v585 = vmul.f32 %v249, %v488
      %v586 = vmul.f32 %v250, %v493
      %v587 = vmul.f32 %v251, %v493
      %v588 = vmul.f32 %v252, %v498
      %v589 = vmul.f32 %v253, %v498
      %v590 = vmul.f32 %v254, %v503
      %v591 = vmul.f32 %v255, %v503
      %v592 = vmul.f32 %v256, %v508
      %v593 = vmul.f32 %v257, %v508
      %594 = vst [vmem:[%s172] sm:$0xff] %v510
      %vm595 = vcmask 556032
      %596 = vst.msk [vmem:[%s172 + $0x8] sm:$0xff] %vm595, %v511
      %597 = vst [vmem:[%s172 + $0x10] sm:$0xff] %v512
      %598 = vst.msk [vmem:[%s172 + $0x18] sm:$0xff] %vm595, %v513
      %599 = vst [vmem:[%s172 + $0x20] sm:$0xff] %v514
      %600 = vst.msk [vmem:[%s172 + $0x28] sm:$0xff] %vm595, %v515
      %601 = vst [vmem:[%s172 + $0x30] sm:$0xff] %v516
      %602 = vst.msk [vmem:[%s172 + $0x38] sm:$0xff] %vm595, %v517
      %603 = vst [vmem:[%s172 + $0x40] sm:$0xff] %v518
      %604 = vst.msk [vmem:[%s172 + $0x48] sm:$0xff] %vm595, %v519
      %605 = vst [vmem:[%s172 + $0x50] sm:$0xff] %v520
      %606 = vst.msk [vmem:[%s172 + $0x58] sm:$0xff] %vm595, %v521
      %607 = vst [vmem:[%s172 + $0x60] sm:$0xff] %v522
      %608 = vst.msk [vmem:[%s172 + $0x68] sm:$0xff] %vm595, %v523
      %609 = vst [vmem:[%s172 + $0x70] sm:$0xff] %v524
      %610 = vst.msk [vmem:[%s172 + $0x78] sm:$0xff] %vm595, %v525
      %611 = vst [vmem:[%s172 + $0x80] sm:$0xff] %v526
      %612 = vst.msk [vmem:[%s172 + $0x88] sm:$0xff] %vm595, %v527
      %613 = vst [vmem:[%s172 + $0x90] sm:$0xff] %v528
      %614 = vst.msk [vmem:[%s172 + $0x98] sm:$0xff] %vm595, %v529
      %615 = vst [vmem:[%s172 + $0xa0] sm:$0xff] %v530
      %616 = vst.msk [vmem:[%s172 + $0xa8] sm:$0xff] %vm595, %v531
      %617 = vst [vmem:[%s172 + $0xb0] sm:$0xff] %v532
      %618 = vst.msk [vmem:[%s172 + $0xb8] sm:$0xff] %vm595, %v533
      %619 = vst [vmem:[%s172 + $0xc0] sm:$0xff] %v534
      %620 = vst.msk [vmem:[%s172 + $0xc8] sm:$0xff] %vm595, %v535
      %621 = vst [vmem:[%s172 + $0xd0] sm:$0xff] %v536
      %622 = vst.msk [vmem:[%s172 + $0xd8] sm:$0xff] %vm595, %v537
      %623 = vst [vmem:[%s172 + $0xe0] sm:$0xff] %v538
      %624 = vst.msk [vmem:[%s172 + $0xe8] sm:$0xff] %vm595, %v539
      %625 = vst [vmem:[%s172 + $0xf0] sm:$0xff] %v540
      %626 = vst.msk [vmem:[%s172 + $0xf8] sm:$0xff] %vm595, %v541
      %627 = vst [vmem:[%s172 + $0x100] sm:$0xff] %v542
      %628 = vst.msk [vmem:[%s172 + $0x108] sm:$0xff] %vm595, %v543
      %629 = vst [vmem:[%s172 + $0x110] sm:$0xff] %v544
      %630 = vst.msk [vmem:[%s172 + $0x118] sm:$0xff] %vm595, %v545
      %631 = vst [vmem:[%s172 + $0x120] sm:$0xff] %v546
      %632 = vst.msk [vmem:[%s172 + $0x128] sm:$0xff] %vm595, %v547
      %633 = vst [vmem:[%s172 + $0x130] sm:$0xff] %v548
      %634 = vst.msk [vmem:[%s172 + $0x138] sm:$0xff] %vm595, %v549
      %635 = vst [vmem:[%s172 + $0x140] sm:$0xff] %v550
      %636 = vst.msk [vmem:[%s172 + $0x148] sm:$0xff] %vm595, %v551
      %637 = vst [vmem:[%s172 + $0x150] sm:$0xff] %v552
      %638 = vst.msk [vmem:[%s172 + $0x158] sm:$0xff] %vm595, %v553
      %639 = vst [vmem:[%s172 + $0x160] sm:$0xff] %v554
      %640 = vst.msk [vmem:[%s172 + $0x168] sm:$0xff] %vm595, %v555
      %641 = vst [vmem:[%s172 + $0x170] sm:$0xff] %v556
      %642 = vst.msk [vmem:[%s172 + $0x178] sm:$0xff] %vm595, %v557
      %643 = vst [vmem:[%s172 + $0x180] sm:$0xff] %v558
      %644 = vst.msk [vmem:[%s172 + $0x188] sm:$0xff] %vm595, %v559
      %645 = vst [vmem:[%s172 + $0x190] sm:$0xff] %v560
      %646 = vst.msk [vmem:[%s172 + $0x198] sm:$0xff] %vm595, %v561
      %647 = vst [vmem:[%s172 + $0x1a0] sm:$0xff] %v562
      %648 = vst.msk [vmem:[%s172 + $0x1a8] sm:$0xff] %vm595, %v563
      %649 = vst [vmem:[%s172 + $0x1b0] sm:$0xff] %v564
      %650 = vst.msk [vmem:[%s172 + $0x1b8] sm:$0xff] %vm595, %v565
      %651 = vst [vmem:[%s172 + $0x1c0] sm:$0xff] %v566
      %652 = vst.msk [vmem:[%s172 + $0x1c8] sm:$0xff] %vm595, %v567
      %653 = vst [vmem:[%s172 + $0x1d0] sm:$0xff] %v568
      %654 = vst.msk [vmem:[%s172 + $0x1d8] sm:$0xff] %vm595, %v569
      %655 = vst [vmem:[%s172 + $0x1e0] sm:$0xff] %v570
      %656 = vst.msk [vmem:[%s172 + $0x1e8] sm:$0xff] %vm595, %v571
      %657 = vst [vmem:[%s172 + $0x1f0] sm:$0xff] %v572
      %658 = vst.msk [vmem:[%s172 + $0x1f8] sm:$0xff] %vm595, %v573
      %659 = vst [vmem:[%s172 + $0x200] sm:$0xff] %v574
      %660 = vst.msk [vmem:[%s172 + $0x208] sm:$0xff] %vm595, %v575
      %661 = vst [vmem:[%s172 + $0x210] sm:$0xff] %v576
      %662 = vst.msk [vmem:[%s172 + $0x218] sm:$0xff] %vm595, %v577
      %663 = vst [vmem:[%s172 + $0x220] sm:$0xff] %v578
      %664 = vst.msk [vmem:[%s172 + $0x228] sm:$0xff] %vm595, %v579
      %665 = vst [vmem:[%s172 + $0x230] sm:$0xff] %v580
      %666 = vst.msk [vmem:[%s172 + $0x238] sm:$0xff] %vm595, %v581
      %667 = vst [vmem:[%s172 + $0x240] sm:$0xff] %v582
      %668 = vst.msk [vmem:[%s172 + $0x248] sm:$0xff] %vm595, %v583
      %669 = vst [vmem:[%s172 + $0x250] sm:$0xff] %v584
      %670 = vst.msk [vmem:[%s172 + $0x258] sm:$0xff] %vm595, %v585
      %671 = vst [vmem:[%s172 + $0x260] sm:$0xff] %v586
      %672 = vst.msk [vmem:[%s172 + $0x268] sm:$0xff] %vm595, %v587
      %673 = vst [vmem:[%s172 + $0x270] sm:$0xff] %v588
      %674 = vst.msk [vmem:[%s172 + $0x278] sm:$0xff] %vm595, %v589
      %675 = vst [vmem:[%s172 + $0x280] sm:$0xff] %v590
      %676 = vst.msk [vmem:[%s172 + $0x288] sm:$0xff] %vm595, %v591
      %677 = vst [vmem:[%s172 + $0x290] sm:$0xff] %v592
      %678 = vst.msk [vmem:[%s172 + $0x298] sm:$0xff] %vm595, %v593
      %s679 = smul.u32 42, %s13
      %p680 = scmp.lt.s32.totalorder %s679, 83
      %s681 = scalar_select %p680, %s679, 83
      %s682 = smul.addr %s681, 2
      %s683 = smul.addr %s682, 8
      %s684 = scalar_lea.vmem %s2, %s683
      // Predicated region
      $region29: #{tpu_custom_call.1} parent=27 // pred_check
        %p685 = pneg %p83
      $region30: #{tpu_custom_call.1} parent=27 // pred_check_branch
        %687 = sbr.rel (%p685) target = $region32
      $region31: #{tpu_custom_call.1} parent=27 // pred_region
        %s688 = smul.u32 42, %s13
      $region32: #{tpu_custom_call.1} parent=27 // pred_fallthru
        _
    $region28: #{tpu_custom_call.1} parent=5 // pred_fallthru
      _
    %p689 = scmp.le.s32.totalorder 2, %s8
    // Predicated region
    $region33: #{tpu_custom_call.1} parent=5 // pred_check
      %p690 = pneg %p689
    $region34: #{tpu_custom_call.1} parent=5 // pred_check_branch
      %692 = sbr.rel (%p690) target = $region36
    $region35: #{tpu_custom_call.1} parent=5 // pred_region
      %s693 = ssub.s32 %s8, 2
      // Predicated region
      $region37: #{tpu_custom_call.1} parent=35 // pred_check
        %p694 = pneg %p89
      $region38: #{tpu_custom_call.1} parent=35 // pred_check_branch
        %696 = sbr.rel (%p694) target = $region40
      $region39: #{tpu_custom_call.1} parent=35 // pred_region
        %s697 = smul.u32 42, %s14
        %p698 = scmp.lt.s32.totalorder %s697, 83
        %s699 = scalar_select %p698, %s697, 83
        %s700 = smul.addr %s699, 2
        %s701 = smul.addr %s700, 8
        %s702 = scalar_lea.vmem %s2, %s701
      $region40: #{tpu_custom_call.1} parent=35 // pred_fallthru
        _
    $region36: #{tpu_custom_call.1} parent=5 // pred_fallthru
      _
  $region6: #{tpu_custom_call.1} parent=0 // loop_footer
    %s12 = sadd.s32 1, %s8
  $region7: #{tpu_custom_call.1} parent=0 // loop_footer_branch
    %7 = sbr.rel target = $region3
  $region8: #{tpu_custom_call.1} parent=0 // loop_exit
    _

</llo_original>
